<compile_context>
chip_gen: v7x
topology: tpu7x:2x2x1
jax: 0.10.0
libtpu: 0.0.40
codegen_flags: <defaults>
</compile_context>

<pallas_src>
import jax
import jax.numpy as jnp
from jax.experimental import pallas as pl
from jax.experimental.pallas import tpu as pltpu


def _round_up(x, m):
    return ((x + m - 1) // m) * m


def _cdiv(a, b):
    return -(-a // b)


def _embedding_kernel(idx_ref, table_ref, out_ref):
    # idx_ref:   (tile_rows, 1)                 int32
    # table_ref: (n_embeddings, embedding_dim)  table dtype (full, unpadded)
    # out_ref:   (tile_rows, embedding_dim)     output dtype
    idx = idx_ref[...]                                    # (tile_rows, 1)
    tile_rows = idx.shape[0]
    k = table_ref.shape[0]

    # One-hot selection matrix over the vocab axis. padding_idx=0 (and any
    # negative index) selects nothing -> zero output row.
    iota = jax.lax.broadcasted_iota(jnp.int32, (tile_rows, k), 1)
    one_hot = ((iota == idx) & (idx > 0)).astype(table_ref.dtype)

    # Gather-as-matmul on the MXU; f32 accumulation.
    out_ref[...] = jnp.dot(
        one_hot, table_ref[...], preferred_element_type=jnp.float32
    ).astype(out_ref.dtype)


def cg_bead_embedding(
    embedding_property,
    embedding_table,
    *,
    target_tile_rows=1024,
    compute_dtype=None,   # e.g. jnp.bfloat16 to halve table DMA/VMEM bytes
                          # (embeddings then bf16-rounded before the f32 store)
):
    """Pallas equivalent of CGBeadEmbedding.forward.

    embedding_property: int   [n_frames, n_beads]
    embedding_table:    float [n_embeddings, embedding_dim]
    returns:            float [n_frames, n_beads, embedding_dim]
    """
    n_frames, n_beads = embedding_property.shape
    n_embeddings, embedding_dim = embedding_table.shape
    out_dtype = embedding_table.dtype

    table = embedding_table
    if compute_dtype is not None:
        table = table.astype(compute_dtype)

    n_rows = n_frames * n_beads

    # Per-generation VMEM capacity; fall back to v7x's 64 MiB (the tightest).
    try:
        vmem_cap = int(pltpu.get_tpu_info().vmem_capacity_bytes)
    except Exception:
        vmem_cap = 64 * 1024 * 1024
    vmem_budget = int(0.75 * vmem_cap)

    # Pick tile_rows to minimize row padding; ensure >=2 grid steps when the
    # input is big enough so both v7x TensorCores get work.
    num_tiles = max(1, _cdiv(n_rows, int(target_tile_rows)))
    if num_tiles == 1 and n_rows >= 16:
        num_tiles = 2
    tile_rows = _round_up(max(1, _cdiv(n_rows, num_tiles)), 8)

    # VMEM footprint estimate (VMEM tiles are (8,128)-padded internally).
    d_lanes = _round_up(embedding_dim, 128)
    itemsize_tbl = jnp.dtype(table.dtype).itemsize
    itemsize_out = jnp.dtype(out_dtype).itemsize
    table_block_bytes = _round_up(n_embeddings, 8) * d_lanes * itemsize_tbl

    def footprint(tr):
        out_block = tr * d_lanes * itemsize_out
        idx_block = tr * 128 * 4          # (tile_rows,1) int32 -> lane-padded
        return 2 * table_block_bytes + 2 * out_block + 2 * idx_block + (2 << 20)

    while footprint(tile_rows) > vmem_budget and tile_rows > 8:
        tile_rows = _round_up(max(8, tile_rows // 2), 8)
    # TODO(synk): if 2*table_block_bytes alone exceeds the budget, tile the d
    # axis with a second parallel grid dimension instead of shrinking rows.

    n_rows_padded = _round_up(n_rows, tile_rows)
    grid = (n_rows_padded // tile_rows,)

    idx_flat = embedding_property.reshape(n_rows).astype(jnp.int32)
    if n_rows_padded != n_rows:
        idx_flat = jnp.pad(idx_flat, (0, n_rows_padded - n_rows))
    idx_col = idx_flat.reshape(n_rows_padded, 1)

    vmem_limit = int(min(max(footprint(tile_rows), 32 * 1024 * 1024), vmem_cap))

    cost = pl.CostEstimate(
        flops=2 * n_rows_padded * n_embeddings * embedding_dim,
        transcendentals=0,
        bytes_accessed=(
            idx_col.size * 4
            + table.size * itemsize_tbl
            + n_rows_padded * embedding_dim * itemsize_out
        ),
    )

    out = pl.pallas_call(
        _embedding_kernel,
        out_shape=jax.ShapeDtypeStruct((n_rows_padded, embedding_dim), out_dtype),
        grid_spec=pltpu.PrefetchScalarGridSpec(
            num_scalar_prefetch=0,
            grid=grid,
            in_specs=[
                # (tile_rows, 1) index column; last dim equals full array dim.
                pl.BlockSpec((tile_rows, 1), lambda i: (i, 0)),
                # Full table block (constant index_map -> fetched once).
                pl.BlockSpec((n_embeddings, embedding_dim), lambda i: (0, 0)),
            ],
            out_specs=pl.BlockSpec((tile_rows, embedding_dim), lambda i: (i, 0)),
        ),
        compiler_params=pltpu.CompilerParams(
            dimension_semantics=("parallel",),
            vmem_limit_bytes=vmem_limit,
        ),
        cost_estimate=cost,
    )(idx_col, table)

    if n_rows_padded != n_rows:
        out = out[:n_rows]
    return out.reshape(n_frames, n_beads, embedding_dim)


def make_embedding_table(key, n_embeddings, embedding_dim):
    """Deterministic nn.Embedding-style init: N(0,1), row 0 zeroed (padding_idx=0)."""
    table = jax.random.normal(key, (n_embeddings, embedding_dim), dtype=jnp.float32)
    table = table.at[0].set(0.0)
    return table


if __name__ == "__main__":
    key = jax.random.PRNGKey(0)
    k_table, k_idx = jax.random.split(key)

    # Small, module-consistent shapes.
    n_frames = 2
    n_beads = 8
    n_embeddings = 11      # 10 physical bead types + 1 padding index
    embedding_dim = 32

    embedding_table = make_embedding_table(k_table, n_embeddings, embedding_dim)

    # Integer bead-type properties in [0, n_embeddings); include zeros (padding).
    embedding_property = jax.random.randint(
        k_idx, (n_frames, n_beads), 0, n_embeddings, dtype=jnp.int32
    )

    out = cg_bead_embedding(embedding_property, embedding_table)
    out = jax.block_until_ready(out)

    # Reference check (plain JAX gather; table row 0 is zero).
    ref = embedding_table[embedding_property]
    assert out.shape == (n_frames, n_beads, embedding_dim)
    assert jnp.allclose(out, ref, atol=1e-6), "mismatch vs reference gather"
    # Padding rows (index 0) must be all zeros.
    pad_mask = embedding_property == 0
    if pad_mask.any():
        assert jnp.all(out[pad_mask] == 0.0)

    print("KERNEL_OK")
</pallas_src>

<mosaic_0001>
module attributes {stable_mosaic.version = 11 : i64} {
  func.func @_embedding_kernel(%arg0: i32, %arg1: memref<8x1xi32, #tpu.memory_space<vmem>>, %arg2: memref<11x32xf32, #tpu.memory_space<vmem>>, %arg3: memref<8x32xf32, #tpu.memory_space<vmem>>) attributes {dimension_semantics = [#tpu.dimension_semantics<parallel>], iteration_bounds = array<i64: 2>, scalar_prefetch = 0 : i64, scratch_operands = 0 : i64, tpu.core_type = #tpu.core_type<tc>, window_params = [{transform_indices = @transform_0, window_bounds = array<i64: 8, 1>}, {pipeline_mode = #tpu.pipeline_mode<synchronous>, transform_indices = @transform_1, window_bounds = array<i64: 11, 32>}, {transform_indices = @transform_2, window_bounds = array<i64: 8, 32>}]} {
    %c0 = arith.constant 0 : index
    %c0_0 = arith.constant 0 : index
    %0 = vector.load %arg1[%c0, %c0_0] : memref<8x1xi32, #tpu.memory_space<vmem>>, vector<8x1xi32>
    %1 = tpu.iota {dimensions = array<i32: 1>} : vector<8x11xi32>
    %2 = vector.broadcast %0 : vector<8x1xi32> to vector<8x11xi32>
    %3 = arith.cmpi eq, %1, %2 : vector<8x11xi32>
    %c0_i32 = arith.constant 0 : i32
    %4 = vector.broadcast %c0_i32 : i32 to vector<8x1xi32>
    %5 = arith.cmpi sgt, %0, %4 : vector<8x1xi32>
    %6 = vector.broadcast %5 : vector<8x1xi1> to vector<8x11xi1>
    %7 = arith.andi %3, %6 : vector<8x11xi1>
    %8 = arith.extui %7 : vector<8x11xi1> to vector<8x11xi32>
    %9 = arith.sitofp %8 : vector<8x11xi32> to vector<8x11xf32>
    %c0_1 = arith.constant 0 : index
    %c0_2 = arith.constant 0 : index
    %10 = vector.load %arg2[%c0_1, %c0_2] : memref<11x32xf32, #tpu.memory_space<vmem>>, vector<11x32xf32>
    %cst = arith.constant dense<0.000000e+00> : vector<8x32xf32>
    %11 = tpu.matmul %9, %10, %cst {dimension_numbers = #tpu.dot_dimension_numbers<[1], [0], [0], [1], [0, 0, 1, 1], [], []>} : vector<8x11xf32>, vector<11x32xf32>, vector<8x32xf32> -> vector<8x32xf32>
    %c0_3 = arith.constant 0 : index
    %c0_4 = arith.constant 0 : index
    %12 = vector.load %arg3[%c0_3, %c0_4] : memref<8x32xf32, #tpu.memory_space<vmem>>, vector<8x32xf32>
    tpu.vector_store %arg3[%c0_3, %c0_4], %11 {strides = array<i32>} : memref<8x32xf32, #tpu.memory_space<vmem>>, vector<8x32xf32>,
    return
  }
  func.func @transform_0(%arg0: i32) -> (i32, i32) {
    %c0_i32 = arith.constant 0 : i32
    %c0_i32_0 = arith.constant 0 : i32
    return %arg0, %c0_i32 : i32, i32
  }
  func.func @transform_1(%arg0: i32) -> (i32, i32) {
    %c0_i32 = arith.constant 0 : i32
    %c0_i32_0 = arith.constant 0 : i32
    %c0_i32_1 = arith.constant 0 : i32
    return %c0_i32, %c0_i32_0 : i32, i32
  }
  func.func @transform_2(%arg0: i32) -> (i32, i32) {
    %c0_i32 = arith.constant 0 : i32
    %c0_i32_0 = arith.constant 0 : i32
    return %arg0, %c0_i32 : i32, i32
  }
}

</mosaic_0001>

<llo_original>
// kernel: tpu_custom_call.1
$region0: #{tpu_custom_call.1}
  #allocation0 [shape = 'u32[]', space=smem, size = 0x4, offset = 0x4, fixed_abs, tag = 'smem constant byte address 0x4 - core index']
  #allocation1 [shape = 'u32[144,128]{1,0:T(1,128)}', space=vmem, size = 0x12000, scoped, tag = 'internal scratch']
  %s0 = inlined_call_operand.vmem [shape: s32[16,1], index: 0, kind: input, shape index: {}]
  %s1 = inlined_call_operand.vmem [shape: f32[11,32], index: 1, kind: input, shape index: {}]
  %s2 = inlined_call_operand.hbm [shape: f32[16,32], index: 2, kind: output, shape index: {}]
  %s3 = sld [smem:[#allocation0]]
  $region41: #{tpu_custom_call.1} parent=0
    _
  %s5 = ssub.s32 1, %s3
  %s6 = scalar_select 0, %s5, %s3
  $region1: #{tpu_custom_call.1} parent=0
    #allocation2 [shape = 'u8[8192]{0}', space=vmem, size = 0x2000, scoped, tag = 'output window, operand 0']
    #allocation3 [shape = 's32[2]{0}', space=sflag, size = 0x8, scoped, tag = 'scoped memory for tpu_custom_call.1']
    %7 = vsyncpa [#allocation3], 0
    %s8 = scalar_lea.sflag [#allocation3], 1
    %9 = vsyncpa %s8, 0
    loop: start=0, step=1, limit=4
    $region2: #{tpu_custom_call.1} parent=1 // loop_pre_header
      _
    $region3: #{tpu_custom_call.1} parent=1 // loop_header
      %s11 = sphi 0, %s15
      %p12 = scmp.ge.s32.totalorder %s11, 4
      %s21 = sphi 0, %s23
      %s24 = sphi 0, %s21
      %s25 = sphi 0, %s24
      %s41 = sphi 0, %s25
      %s45 = sphi 0, %s45
      %s47 = sphi 0, %s45
      %s48 = sphi 0, %s47
      %s62 = sphi 0, %s48
      %s68 = sphi 0, %s70
      %s71 = sphi 0, %s68
      %s72 = sphi 0, %s71
      %s88 = sphi 0, %s72
    $region4: #{tpu_custom_call.1} parent=1 // loop_header_branch
      %14 = sbr.rel (%p12) target = $region8
    $region5: #{tpu_custom_call.1} parent=1 // loop_body
      %s16 = ssub.s32 %s11, 1
      %s17 = ssub.s32 %s11, 2
      %s18 = sadd.s32 %s11, 1
      %s19 = ssub.s32 %s11, %s18
      %p20 = scmp.eq.s32.totalorder %s19, 0
      %s22 = sadd.s32 %s21, 1
      %s23 = scalar_select %p20, %s21, %s22
      %p26 = pneg %p20
      %p27 = scmp.eq.s32.totalorder %s11, 1
      %p28 = por %p26, %p27
      %p29 = scmp.ne.s32.totalorder %s21, %s24
      %p30 = scmp.eq.s32.totalorder %s11, 0
      %p31 = por %p29, %p30
      %p32 = scmp.ne.s32.totalorder %s21, %s24
      %p33 = scmp.eq.s32.totalorder %s16, 1
      %p34 = por %p32, %p33
      %p35 = scmp.ne.s32.totalorder %s24, %s25
      %p36 = scmp.eq.s32.totalorder %s16, 0
      %p37 = por %p35, %p36
      %p38 = scmp.ne.s32.totalorder %s24, %s25
      %p39 = scmp.eq.s32.totalorder %s17, 1
      %p40 = por %p38, %p39
      %p42 = scmp.ne.s32.totalorder %s25, %s41
      %p43 = scmp.eq.s32.totalorder %s17, 0
      %p44 = por %p42, %p43
      %s46 = sadd.s32 %s45, 1
      %p49 = scmp.eq.s32.totalorder %s11, 1
      %p50 = scmp.ne.s32.totalorder %s45, %s47
      %p51 = scmp.eq.s32.totalorder %s11, 0
      %p52 = por %p50, %p51
      %p53 = scmp.ne.s32.totalorder %s45, %s47
      %p54 = scmp.eq.s32.totalorder %s16, 1
      %p55 = por %p53, %p54
      %p56 = scmp.ne.s32.totalorder %s47, %s48
      %p57 = scmp.eq.s32.totalorder %s16, 0
      %p58 = por %p56, %p57
      %p59 = scmp.ne.s32.totalorder %s47, %s48
      %p60 = scmp.eq.s32.totalorder %s17, 1
      %p61 = por %p59, %p60
      %p63 = scmp.ne.s32.totalorder %s48, %s62
      %p64 = scmp.eq.s32.totalorder %s17, 0
      %p65 = por %p63, %p64
      %s66 = ssub.s32 %s11, %s18
      %p67 = scmp.eq.s32.totalorder %s66, 0
      %s69 = sadd.s32 %s68, 1
      %s70 = scalar_select %p67, %s68, %s69
      %p73 = pneg %p67
      %p74 = scmp.eq.s32.totalorder %s11, 1
      %p75 = por %p73, %p74
      %p76 = scmp.ne.s32.totalorder %s68, %s71
      %p77 = scmp.eq.s32.totalorder %s11, 0
      %p78 = por %p76, %p77
      %p79 = scmp.ne.s32.totalorder %s68, %s71
      %p80 = scmp.eq.s32.totalorder %s16, 1
      %p81 = por %p79, %p80
      %p82 = scmp.ne.s32.totalorder %s71, %s72
      %p83 = scmp.eq.s32.totalorder %s16, 0
      %p84 = por %p82, %p83
      %p85 = scmp.ne.s32.totalorder %s71, %s72
      %p86 = scmp.eq.s32.totalorder %s17, 1
      %p87 = por %p85, %p86
      %p89 = scmp.ne.s32.totalorder %s72, %s88
      %p90 = scmp.eq.s32.totalorder %s17, 0
      %p91 = por %p89, %p90
      %p92 = scmp.le.s32.totalorder 1, %s11
      %p93 = scmp.lt.s32.totalorder %s11, 3
      %p94 = pnand %p92, %p93
      %p95 = pneg %p94
      // Predicated region
      $region9: #{tpu_custom_call.1} parent=5 // pred_check
        _
      $region10: #{tpu_custom_call.1} parent=5 // pred_check_branch
        %97 = sbr.rel (%p94) target = $region12
      $region11: #{tpu_custom_call.1} parent=5 // pred_region
        %s98 = ssub.s32 %s11, 1
        // Predicated region
        $region13: #{tpu_custom_call.1} parent=11 // pred_check
          %p99 = pneg %p58
        $region14: #{tpu_custom_call.1} parent=11 // pred_check_branch
          %101 = sbr.rel (%p99) target = $region16
        $region15: #{tpu_custom_call.1} parent=11 // pred_region
          _
        $region16: #{tpu_custom_call.1} parent=11 // pred_fallthru
          _
      $region12: #{tpu_custom_call.1} parent=5 // pred_fallthru
        _
      %p102 = scmp.lt.s32.totalorder %s11, 2
      // Predicated region
      $region17: #{tpu_custom_call.1} parent=5 // pred_check
        %p103 = pneg %p102
      $region18: #{tpu_custom_call.1} parent=5 // pred_check_branch
        %105 = sbr.rel (%p103) target = $region20
      $region19: #{tpu_custom_call.1} parent=5 // pred_region
        // Predicated region
        $region21: #{tpu_custom_call.1} parent=19 // pred_check
          %p106 = pneg %p31
        $region22: #{tpu_custom_call.1} parent=19 // pred_check_branch
          %108 = sbr.rel (%p106) target = $region24
        $region23: #{tpu_custom_call.1} parent=19 // pred_region
          %p109 = scmp.lt.s32.totalorder %s11, 1
          %s110 = scalar_select %p109, %s11, 1
          %s111 = smul.addr %s110, 8
          %s112 = scalar_lea.vmem %s0, %s111
        $region24: #{tpu_custom_call.1} parent=19 // pred_fallthru
          _
      $region20: #{tpu_custom_call.1} parent=5 // pred_fallthru
        _
      %p113 = scmp.le.s32.totalorder 1, %s11
      %p114 = scmp.lt.s32.totalorder %s11, 3
      %p115 = pnand %p113, %p114
      %p116 = pneg %p115
      // Predicated region
      $region25: #{tpu_custom_call.1} parent=5 // pred_check
        _
      $region26: #{tpu_custom_call.1} parent=5 // pred_check_branch
        %118 = sbr.rel (%p115) target = $region28
      $region27: #{tpu_custom_call.1} parent=5 // pred_region
        %s119 = ssub.s32 %s11, 1
        %p120 = scmp.lt.s32.totalorder %s16, 1
        %s121 = scalar_select %p120, %s16, 1
        %s122 = smul.addr %s121, 8
        %s123 = scalar_lea.vmem %s0, %s122
        %p124 = pneg %p37
        %p125 = pneg %p34
        %p126 = pneg %p58
        %p127 = pneg %p55
        %p128 = pneg %p84
        %p129 = pneg %p81
        %s130 = sand.u32 %s71, 1
        %s131 = scalar_lea.sflag [#allocation3], %s130
        %s132 = sand.u32 %s71, 1
        %s133 = smul.addr %s132, 8
        %s134 = scalar_lea.vmem [#allocation2], %s133
        %p135 = scmp.lt.s32.totalorder %s16, 1
        %s136 = scalar_select %p135, %s16, 1
        %s137 = smul.addr %s136, 8
        %s138 = scalar_lea.vmem %s0, %s137
        %v139 = vld [vmem:[%s138] sm:$0xff]
        %v140 = vlaneseq
        %v141 = vand.u32 %v140, 127
        %142 = vset.pattern.permute.xlu0 0
        %143 = vperm.xlu0 %142, %v139
        %v144 = vpop.permute.xlu0 %143
        %vm145 = vcmp.eq.s32.totalorder %v141, %v144
        %vm146 = vcmp.gt.s32.totalorder %v139, 0
        %v147 = vsel %vm146, 1, 0
        %148 = vset.pattern.permute.xlu0 0
        %149 = vperm.xlu0 %148, %v147
        %v150 = vpop.permute.xlu0 %149
        %vm151 = vcmp.eq.s32.totalorder %v150, 1
        %vm152 = vmand %vm145, %vm151
        %v153 = vsel %vm152, 1, 0
        %v154 = vcvt.s32.f32 %v153
        %v155 = vld [vmem:[%s1] sm:$0xff]
        %v156 = vld [vmem:[%s1 + $0x8] sm:$0x7]
        %vm157 = vcmask 89088
        %v159 = vsel %vm157, %v154, 0
        %vm161 = vcmask 1042432
        %v163 = vsel %vm161, %v156, 0
        %165 = vmatprep.subr.mxu0 0.0
        %166 = vmatpush1.msra.mxu0 %v155
        %167 = vmatprep.subr.mxu0 0.0
        %168 = vmatpush1.msra.mxu0 %v163
        %169 = vmatprep.subr.mxu0 0.0
        %170 = vmatpush1.msra.mxu0 0.0
        %171 = vmatprep.subr.mxu0 0.0
        %172 = vmatpush1.msra.mxu0 0.0
        %173 = vmatprep.subr.mxu0 0.0
        %174 = vmatpush1.msra.mxu0 0.0
        %175 = vmatprep.subr.mxu0 0.0
        %176 = vmatpush1.msra.mxu0 0.0
        %177 = vmatprep.subr.mxu0 0.0
        %178 = vmatpush1.msra.mxu0 0.0
        %179 = vmatprep.subr.mxu0 0.0
        %180 = vmatpush1.msra.mxu0 0.0
        %181 = vmatprep.subr.mxu0 0.0
        %182 = vmatpush1.msra.mxu0 0.0
        %183 = vmatprep.subr.mxu0 0.0
        %184 = vmatpush1.msra.mxu0 0.0
        %185 = vmatprep.subr.mxu0 0.0
        %186 = vmatpush1.msra.mxu0 0.0
        %187 = vmatprep.subr.mxu0 0.0
        %188 = vmatpush1.msra.mxu0 0.0
        %189 = vmatprep.subr.mxu0 0.0
        %190 = vmatpush1.msra.mxu0 0.0
        %191 = vmatprep.subr.mxu0 0.0
        %192 = vmatpush1.msra.mxu0 0.0
        %193 = vmatprep.subr.mxu0 0.0
        %194 = vmatpush1.msra.mxu0 0.0
        %195 = vmatprep.subr.mxu0 0.0
        %196 = vmatpush1.msra.mxu0 0.0
        %197 = vmatprep.subr.mxu0 0.0
        %198 = vmatpush1.msra.mxu0 0.0
        %199 = vmatprep.subr.mxu0 0.0
        %200 = vmatpush1.msra.mxu0 0.0
        %201 = vmatprep.subr.mxu0 0.0
        %202 = vmatpush1.msra.mxu0 0.0
        %203 = vmatprep.subr.mxu0 0.0
        %204 = vmatpush1.msra.mxu0 0.0
        %205 = vmatprep.subr.mxu0 0.0
        %206 = vmatpush1.msra.mxu0 0.0
        %207 = vmatprep.subr.mxu0 0.0
        %208 = vmatpush1.msra.mxu0 0.0
        %209 = vmatprep.subr.mxu0 0.0
        %210 = vmatpush1.msra.mxu0 0.0
        %211 = vmatprep.subr.mxu0 0.0
        %212 = vmatpush1.msra.mxu0 0.0
        %213 = vmatprep.subr.mxu0 0.0
        %214 = vmatpush1.msra.mxu0 0.0
        %215 = vmatprep.subr.mxu0 0.0
        %216 = vmatpush1.msra.mxu0 0.0
        %217 = vmatprep.subr.mxu0 0.0
        %218 = vmatpush1.msra.mxu0 0.0
        %219 = vmatprep.subr.mxu0 0.0
        %220 = vmatpush1.msra.mxu0 0.0
        %221 = vmatprep.subr.mxu0 0.0
        %222 = vmatpush1.msra.mxu0 0.0
        %223 = vmatprep.subr.mxu0 0.0
        %224 = vmatpush1.msra.mxu0 0.0
        %225 = vmatprep.subr.mxu0 0.0
        %226 = vmatpush1.msra.mxu0 0.0
        %227 = vmatprep.subr.mxu0 0.0
        %228 = vmatpush1.msra.mxu0 0.0
        %229 = vmatprep.mubr.f32.mxu0 0.0
        %230 = vmatmul.mubr.f32.gmra.mrb[0].mxu0 %v159
        %v231 = vpop.f32.mrb[0].mxu0
        %v232 = vadd.f32 0.0, %v231
        %v233 = vpop.f32.mrb[0].mxu0
        %234 = vdwg.mxu0
        %vm235 = vcmask 261120
        %236 = vst.msk [vmem:[%s134] sm:$0xff] %vm235, %v232
        %s237 = sand.u32 %s71, 1
        %s238 = scalar_lea.sflag [#allocation3], %s237
        %s239 = sand.u32 %s71, 1
        %s240 = smul.addr %s239, 8
        %s241 = scalar_lea.vmem [#allocation2], %s240
        // Predicated region
        $region29: #{tpu_custom_call.1} parent=27 // pred_check
          %p242 = pneg %p81
        $region30: #{tpu_custom_call.1} parent=27 // pred_check_branch
          %244 = sbr.rel (%p242) target = $region32
        $region31: #{tpu_custom_call.1} parent=27 // pred_region
          %s246 = ssub.s32 128, 128
          %247 = vsyncadd %s238, %s246
          %s248 = smul.addr %s16, 128
          %s249 = scalar_lea.hbm %s2, %s248
          %s251 = sshll.u32 %s241, 4
          %s252 = int_to_ptr.vmem [resolvable:$true] %s251
          %254 = dma.vmem_to_hbm [thread:$0]  %s252, 128, %s249, %s238
        $region32: #{tpu_custom_call.1} parent=27 // pred_fallthru
          _
      $region28: #{tpu_custom_call.1} parent=5 // pred_fallthru
        _
      %p255 = scmp.le.s32.totalorder 2, %s11
      // Predicated region
      $region33: #{tpu_custom_call.1} parent=5 // pred_check
        %p256 = pneg %p255
      $region34: #{tpu_custom_call.1} parent=5 // pred_check_branch
        %258 = sbr.rel (%p256) target = $region36
      $region35: #{tpu_custom_call.1} parent=5 // pred_region
        %s259 = ssub.s32 %s11, 2
        // Predicated region
        $region37: #{tpu_custom_call.1} parent=35 // pred_check
          %p260 = pneg %p87
        $region38: #{tpu_custom_call.1} parent=35 // pred_check_branch
          %262 = sbr.rel (%p260) target = $region40
        $region39: #{tpu_custom_call.1} parent=35 // pred_region
          %s263 = sand.u32 %s72, 1
          %s264 = scalar_lea.sflag [#allocation3], %s263
          %s265 = sand.u32 %s72, 1
          %s266 = smul.addr %s265, 8
          %s267 = scalar_lea.vmem [#allocation2], %s266
          %268 = dma.done %s264, 128
        $region40: #{tpu_custom_call.1} parent=35 // pred_fallthru
          _
      $region36: #{tpu_custom_call.1} parent=5 // pred_fallthru
        _
    $region6: #{tpu_custom_call.1} parent=1 // loop_footer
      %s15 = sadd.s32 1, %s11
    $region7: #{tpu_custom_call.1} parent=1 // loop_footer_branch
      %10 = sbr.rel target = $region3
    $region8: #{tpu_custom_call.1} parent=1 // loop_exit
      _
    %269 = vsyncpa [#allocation3], 1
    %s270 = scalar_lea.sflag [#allocation3], 1
    %271 = vsyncpa %s270, 1

</llo_original>
